<compile_context>
chip_gen: v7x
topology: tpu7x:2x2x1
jax: 0.10.0
libtpu: 0.0.40
codegen_flags: <defaults>
</compile_context>

<pallas_src>
import functools

import jax
import jax.numpy as jnp
from jax.experimental import pallas as pl
from jax.experimental.pallas import tpu as pltpu


def _round_up(x, m):
    return ((x + m - 1) // m) * m


def _pick_block_and_vmem(batch_size, num_classes):
    """Pick a batch-tile size and scoped-VMEM limit per TPU generation."""
    kind = ""
    try:
        kind = jax.devices()[0].device_kind.lower()
    except Exception:
        pass
    is_v7 = ("v7" in kind) or ("tpu7" in kind) or ("tpu 7" in kind)

    # Target f32 working-set bytes for one pred block (the kernel upcasts to
    # f32 internally, so size by element count * 4 regardless of input dtype).
    target_f32_bytes = (4 if is_v7 else 8) * 1024 * 1024
    # Physical VMEM: 128 MiB (v5e/v6e) vs 64 MiB (v7x). Leave headroom for
    # double-buffered inputs + ~3-4 live f32 temporaries.
    vmem_limit = (48 if is_v7 else 96) * 1024 * 1024

    max_rows = max(8, target_f32_bytes // max(1, num_classes * 4))
    block_b = min(max_rows, 4096, _round_up(batch_size, 8))
    block_b = max(8, (block_b // 8) * 8)
    return block_b, vmem_limit


def _gce_kernel(pred_ref, labels_ref, w_ref, out_ref, *, q, label_smoothing,
                num_classes, tb, batch_size):
    pred = pred_ref[...].astype(jnp.float32)        # (TB, C)
    labels = labels_ref[...]                        # (TB, 1) int32
    w = w_ref[...].astype(jnp.float32)              # (TB, 1) gathered class weights

    # Softmax pieces over classes (lane axis); reciprocal-multiply form.
    m = jnp.max(pred, axis=1, keepdims=True)                        # (TB, 1)
    e = jnp.exp(pred - m)                                           # (TB, C)
    denom = jnp.sum(e, axis=1, keepdims=True)                       # (TB, 1)
    inv = pl.reciprocal(denom)                                      # exact 1/x on (TB, 1)

    # Label-class probability without materializing p or a float one-hot:
    # one select + one cross-lane reduce, then (TB, 1)-sized scale/clip.
    class_ids = jax.lax.broadcasted_iota(jnp.int32, pred.shape, 1)  # (TB, C)
    hit_mask = class_ids == labels                                  # (TB, C) bool
    e_hit = jnp.sum(jnp.where(hit_mask, e, 0.0), axis=1, keepdims=True)  # (TB, 1)
    s_hit = jnp.clip(e_hit * inv, 1e-07, 1.0)                       # clip(p_label)

    if label_smoothing == 0.0:
        s = s_hit
    else:
        # Reference sums clip(p, 1e-7, 1) over all classes -> keep the single
        # remaining full-tile pass here to match the PyTorch forward exactly.
        p = jnp.clip(e * inv, 1e-07, 1.0)                           # (TB, C)
        s_all = jnp.sum(p, axis=1, keepdims=True)                   # (TB, 1)
        s = (1.0 - label_smoothing) * s_hit + (label_smoothing / num_classes) * s_all

    gce = (1.0 - jnp.power(s, q)) / q                               # (TB, 1)
    gce = gce * w                                                   # (TB, 1)

    # Unconditional mask: rows past the true batch (partial last block read
    # garbage from HBM) are forced to zero.  jnp.where does not propagate
    # NaN/inf from the unselected branch.
    row0 = pl.program_id(0) * tb
    row_ids = row0 + jax.lax.broadcasted_iota(jnp.int32, gce.shape, 0)
    gce = jnp.where(row_ids < batch_size, gce, 0.0)

    out_ref[...] = gce


def gce_loss(pred, labels, class_weights, *, q=0.7, label_smoothing=0.0,
             reduction="mean", block_b=None):
    """pred: (B, C) float, labels: (B,) int, class_weights: (C,) float.

    reduction='mean' -> mean over the batch; anything else (incl. 'none')
    follows the PyTorch module's code path and returns the sum.
    """
    B, C = pred.shape

    auto_block, vmem_limit = _pick_block_and_vmem(B, C)
    if block_b is None:
        block_b = auto_block
    else:
        block_b = max(8, _round_up(block_b, 8))

    num_blocks = pl.cdiv(B, block_b)

    labels = labels.astype(jnp.int32)
    w = class_weights.astype(jnp.float32)[labels].reshape(B, 1)     # gather outside kernel
    labels2d = labels.reshape(B, 1)

    kernel = functools.partial(
        _gce_kernel,
        q=float(q),
        label_smoothing=float(label_smoothing),
        num_classes=C,
        tb=block_b,
        batch_size=B,
    )

    # No padding of pred/labels/w: the partial last block is masked in-kernel
    # and its out-of-bounds output rows are dropped by the pipeline.
    per_row = pl.pallas_call(
        kernel,
        out_shape=jax.ShapeDtypeStruct((B, 1), jnp.float32),
        grid=(num_blocks,),
        in_specs=[
            pl.BlockSpec((block_b, C), lambda i: (i, 0)),
            pl.BlockSpec((block_b, 1), lambda i: (i, 0)),
            pl.BlockSpec((block_b, 1), lambda i: (i, 0)),
        ],
        out_specs=pl.BlockSpec((block_b, 1), lambda i: (i, 0)),
        compiler_params=pltpu.CompilerParams(
            dimension_semantics=("parallel",),
            vmem_limit_bytes=vmem_limit),
    )(pred, labels2d, w)

    total = jnp.sum(per_row)
    if reduction == "mean":
        return total / jnp.float32(B)
    return total


def gce_loss_ref(pred, labels, class_weights, *, q=0.7, label_smoothing=0.0,
                 reduction="mean"):
    """Pure-JAX reference mirroring the PyTorch forward."""
    C = pred.shape[1]
    p = jax.nn.softmax(pred.astype(jnp.float32), axis=1)
    p = jnp.clip(p, 1e-07, 1.0)
    oh = jax.nn.one_hot(labels, C, dtype=jnp.float32)
    oh = (1.0 - label_smoothing) * oh + label_smoothing / C
    gce = (1.0 - jnp.power(jnp.sum(oh * p, axis=1), q)) / q
    gce = gce * class_weights[labels]
    return jnp.mean(gce) if reduction == "mean" else jnp.sum(gce)


if __name__ == "__main__":
    key = jax.random.PRNGKey(0)
    k1, k2 = jax.random.split(key)

    B, C = 12, 32  # B not a multiple of the block -> exercises the masked partial block
    pred = jax.random.normal(k1, (B, C), dtype=jnp.float32)
    labels = jax.random.randint(k2, (B,), 0, C, dtype=jnp.int32)
    class_weights = jnp.ones((C,), dtype=jnp.float32)

    # config 1: default GCE, mean reduction, multi-block grid (block_b=8 -> 2 blocks,
    # last block partial and masked, no padding pass)
    out1 = gce_loss(pred, labels, class_weights, q=0.7, label_smoothing=0.0,
                    reduction="mean", block_b=8)
    out1 = jax.block_until_ready(out1)
    ref1 = gce_loss_ref(pred, labels, class_weights, q=0.7, label_smoothing=0.0,
                        reduction="mean")
    assert jnp.allclose(out1, ref1, atol=1e-5, rtol=1e-5), (out1, ref1)

    # config 2: label smoothing + sum reduction (exercises the smoothed path)
    out2 = gce_loss(pred, labels, class_weights, q=0.7, label_smoothing=0.1,
                    reduction="sum", block_b=8)
    out2 = jax.block_until_ready(out2)
    ref2 = gce_loss_ref(pred, labels, class_weights, q=0.7, label_smoothing=0.1,
                        reduction="sum")
    assert jnp.allclose(out2, ref2, atol=1e-5, rtol=1e-5), (out2, ref2)

    # config 3: automatic block-size heuristic (single block covering the batch)
    out3 = gce_loss(pred, labels, class_weights, q=0.7, label_smoothing=0.0,
                    reduction="mean")
    out3 = jax.block_until_ready(out3)
    assert jnp.allclose(out3, ref1, atol=1e-5, rtol=1e-5), (out3, ref1)

    print("KERNEL_OK")
</pallas_src>

<mosaic_0001>
module attributes {stable_mosaic.version = 11 : i64} {
  func.func @_gce_kernel(%arg0: i32, %arg1: memref<8x32xf32, #tpu.memory_space<vmem>>, %arg2: memref<8x1xi32, #tpu.memory_space<vmem>>, %arg3: memref<8x1xf32, #tpu.memory_space<vmem>>, %arg4: memref<8x1xf32, #tpu.memory_space<vmem>>) attributes {dimension_semantics = [#tpu.dimension_semantics<parallel>], iteration_bounds = array<i64: 2>, scalar_prefetch = 0 : i64, scratch_operands = 0 : i64, tpu.core_type = #tpu.core_type<tc>, window_params = [{transform_indices = @transform_0, window_bounds = array<i64: 8, 32>}, {transform_indices = @transform_1, window_bounds = array<i64: 8, 1>}, {transform_indices = @transform_2, window_bounds = array<i64: 8, 1>}, {transform_indices = @transform_3, window_bounds = array<i64: 8, 1>}]} {
    %c0 = arith.constant 0 : index
    %c0_0 = arith.constant 0 : index
    %0 = vector.load %arg1[%c0, %c0_0] : memref<8x32xf32, #tpu.memory_space<vmem>>, vector<8x32xf32>
    %c0_1 = arith.constant 0 : index
    %c0_2 = arith.constant 0 : index
    %1 = vector.load %arg2[%c0_1, %c0_2] : memref<8x1xi32, #tpu.memory_space<vmem>>, vector<8x1xi32>
    %c0_3 = arith.constant 0 : index
    %c0_4 = arith.constant 0 : index
    %2 = vector.load %arg3[%c0_3, %c0_4] : memref<8x1xf32, #tpu.memory_space<vmem>>, vector<8x1xf32>
    %cst = arith.constant dense<0xFF800000> : vector<8xf32>
    %3 = vector.multi_reduction <maximumf>, %0, %cst [1] : vector<8x32xf32> to vector<8xf32>
    %4 = vector.shape_cast %3 : vector<8xf32> to vector<8x1xf32>
    %5 = vector.broadcast %4 : vector<8x1xf32> to vector<8x32xf32>
    %6 = arith.subf %0, %5 : vector<8x32xf32>
    %7 = math.exp %6 : vector<8x32xf32>
    %cst_5 = arith.constant dense<0.000000e+00> : vector<8xf32>
    %8 = vector.multi_reduction <add>, %7, %cst_5 [1] : vector<8x32xf32> to vector<8xf32>
    %9 = vector.shape_cast %8 : vector<8xf32> to vector<8x1xf32>
    %10 = tpu.reciprocal %9 : vector<8x1xf32> -> vector<8x1xf32>
    %11 = tpu.iota {dimensions = array<i32: 1>} : vector<8x32xi32>
    %12 = vector.broadcast %1 : vector<8x1xi32> to vector<8x32xi32>
    %13 = arith.cmpi eq, %11, %12 : vector<8x32xi32>
    %cst_6 = arith.constant 0.000000e+00 : f32
    %14 = vector.broadcast %cst_6 : f32 to vector<8x32xf32>
    %15 = arith.select %13, %7, %14 : vector<8x32xi1>, vector<8x32xf32>
    %cst_7 = arith.constant dense<0.000000e+00> : vector<8xf32>
    %16 = vector.multi_reduction <add>, %15, %cst_7 [1] : vector<8x32xf32> to vector<8xf32>
    %17 = vector.shape_cast %16 : vector<8xf32> to vector<8x1xf32>
    %18 = arith.mulf %17, %10 : vector<8x1xf32>
    %cst_8 = arith.constant 1.000000e-07 : f32
    %cst_9 = arith.constant 1.000000e+00 : f32
    %19 = vector.broadcast %cst_8 : f32 to vector<8x1xf32>
    %20 = arith.maximumf %19, %18 : vector<8x1xf32>
    %21 = vector.broadcast %cst_9 : f32 to vector<8x1xf32>
    %22 = arith.minimumf %21, %20 : vector<8x1xf32>
    %cst_10 = arith.constant 0.699999988 : f32
    %23 = vector.broadcast %cst_10 : f32 to vector<8x1xf32>
    %24 = math.powf %22, %23 : vector<8x1xf32>
    %cst_11 = arith.constant 1.000000e+00 : f32
    %25 = vector.broadcast %cst_11 : f32 to vector<8x1xf32>
    %26 = arith.subf %25, %24 : vector<8x1xf32>
    %cst_12 = arith.constant 0.699999988 : f32
    %27 = vector.broadcast %cst_12 : f32 to vector<8x1xf32>
    %28 = arith.divf %26, %27 : vector<8x1xf32>
    %29 = arith.mulf %28, %2 : vector<8x1xf32>
    %c8_i32 = arith.constant 8 : i32
    %30 = arith.muli %arg0, %c8_i32 : i32
    %31 = tpu.iota {dimensions = array<i32: 0>} : vector<8x1xi32>
    %32 = vector.broadcast %30 : i32 to vector<8x1xi32>
    %33 = arith.addi %32, %31 : vector<8x1xi32>
    %c12_i32 = arith.constant 12 : i32
    %34 = vector.broadcast %c12_i32 : i32 to vector<8x1xi32>
    %35 = arith.cmpi slt, %33, %34 : vector<8x1xi32>
    %cst_13 = arith.constant 0.000000e+00 : f32
    %36 = vector.broadcast %cst_13 : f32 to vector<8x1xf32>
    %37 = arith.select %35, %29, %36 : vector<8x1xi1>, vector<8x1xf32>
    %c0_14 = arith.constant 0 : index
    %c0_15 = arith.constant 0 : index
    %38 = vector.load %arg4[%c0_14, %c0_15] : memref<8x1xf32, #tpu.memory_space<vmem>>, vector<8x1xf32>
    tpu.vector_store %arg4[%c0_14, %c0_15], %37 {strides = array<i32>} : memref<8x1xf32, #tpu.memory_space<vmem>>, vector<8x1xf32>,
    return
  }
  func.func @transform_0(%arg0: i32) -> (i32, i32) {
    %c0_i32 = arith.constant 0 : i32
    %c0_i32_0 = arith.constant 0 : i32
    return %arg0, %c0_i32 : i32, i32
  }
  func.func @transform_1(%arg0: i32) -> (i32, i32) {
    %c0_i32 = arith.constant 0 : i32
    %c0_i32_0 = arith.constant 0 : i32
    return %arg0, %c0_i32 : i32, i32
  }
  func.func @transform_2(%arg0: i32) -> (i32, i32) {
    %c0_i32 = arith.constant 0 : i32
    %c0_i32_0 = arith.constant 0 : i32
    return %arg0, %c0_i32 : i32, i32
  }
  func.func @transform_3(%arg0: i32) -> (i32, i32) {
    %c0_i32 = arith.constant 0 : i32
    %c0_i32_0 = arith.constant 0 : i32
    return %arg0, %c0_i32 : i32, i32
  }
}

</mosaic_0001>

<llo_original>
// kernel: tpu_custom_call.1
$region0: #{tpu_custom_call.1}
  #allocation0 [shape = 'u32[]', space=smem, size = 0x4, offset = 0x4, fixed_abs, tag = 'smem constant byte address 0x4 - core index']
  #allocation1 [shape = 'u32[144,128]{1,0:T(1,128)}', space=vmem, size = 0x12000, scoped, tag = 'internal scratch']
  %s0 = inlined_call_operand.hbm [shape: f32[12,32], index: 0, kind: input, shape index: {}]
  %s1 = inlined_call_operand.hbm [shape: s32[12,1], index: 1, kind: input, shape index: {}]
  %s2 = inlined_call_operand.hbm [shape: f32[12,1], index: 2, kind: input, shape index: {}]
  %s3 = inlined_call_operand.hbm [shape: f32[12,1], index: 3, kind: output, shape index: {}]
  %s4 = sld [smem:[#allocation0]]
  $region57: #{tpu_custom_call.1} parent=0
    _
  %s6 = ssub.s32 1, %s4
  %s7 = scalar_select 0, %s6, %s4
  $region1: #{tpu_custom_call.1} parent=0
    #allocation2 [shape = 'u8[8192]{0}', space=vmem, size = 0x2000, scoped, tag = 'input window, operand 0']
    #allocation3 [shape = 's32[2]{0}', space=sflag, size = 0x8, scoped, tag = 'scoped memory for tpu_custom_call.1']
    #allocation4 [shape = 's32[2]{0}', space=sflag, size = 0x8, scoped, tag = 'scoped memory for tpu_custom_call.1']
    #allocation5 [shape = 'u8[8192]{0}', space=vmem, size = 0x2000, scoped, tag = 'input window, operand 1']
    #allocation6 [shape = 's32[2]{0}', space=sflag, size = 0x8, scoped, tag = 'scoped memory for tpu_custom_call.1']
    #allocation7 [shape = 'u8[8192]{0}', space=vmem, size = 0x2000, scoped, tag = 'input window, operand 2']
    #allocation8 [shape = 'u8[8192]{0}', space=vmem, size = 0x2000, scoped, tag = 'output window, operand 0']
    %8 = vsyncpa [#allocation3], 0
    %s9 = scalar_lea.sflag [#allocation3], 1
    %10 = vsyncpa %s9, 0
    %11 = vsyncpa [#allocation6], 0
    %s12 = scalar_lea.sflag [#allocation6], 1
    %13 = vsyncpa %s12, 0
    %14 = vsyncpa [#allocation4], 0
    %s15 = scalar_lea.sflag [#allocation4], 1
    %16 = vsyncpa %s15, 0
    loop: start=0, step=1, limit=4
    $region2: #{tpu_custom_call.1} parent=1 // loop_pre_header
      _
    $region3: #{tpu_custom_call.1} parent=1 // loop_header
      %s18 = sphi 0, %s22
      %p19 = scmp.ge.s32.totalorder %s18, 4
      %s28 = sphi 0, %s30
      %s31 = sphi 0, %s28
      %s32 = sphi 0, %s31
      %s48 = sphi 0, %s32
      %s54 = sphi 0, %s56
      %s57 = sphi 0, %s54
      %s58 = sphi 0, %s57
      %s74 = sphi 0, %s58
      %s80 = sphi 0, %s82
      %s83 = sphi 0, %s80
      %s84 = sphi 0, %s83
      %s100 = sphi 0, %s84
      %s106 = sphi 0, %s108
      %s109 = sphi 0, %s106
      %s110 = sphi 0, %s109
      %s126 = sphi 0, %s110
    $region4: #{tpu_custom_call.1} parent=1 // loop_header_branch
      %21 = sbr.rel (%p19) target = $region8
    $region5: #{tpu_custom_call.1} parent=1 // loop_body
      %s23 = ssub.s32 %s18, 1
      %s24 = ssub.s32 %s18, 2
      %s25 = sadd.s32 %s18, 1
      %s26 = ssub.s32 %s18, %s25
      %p27 = scmp.eq.s32.totalorder %s26, 0
      %s29 = sadd.s32 %s28, 1
      %s30 = scalar_select %p27, %s28, %s29
      %p33 = pneg %p27
      %p34 = scmp.eq.s32.totalorder %s18, 1
      %p35 = por %p33, %p34
      %p36 = scmp.ne.s32.totalorder %s28, %s31
      %p37 = scmp.eq.s32.totalorder %s18, 0
      %p38 = por %p36, %p37
      %p39 = scmp.ne.s32.totalorder %s28, %s31
      %p40 = scmp.eq.s32.totalorder %s23, 1
      %p41 = por %p39, %p40
      %p42 = scmp.ne.s32.totalorder %s31, %s32
      %p43 = scmp.eq.s32.totalorder %s23, 0
      %p44 = por %p42, %p43
      %p45 = scmp.ne.s32.totalorder %s31, %s32
      %p46 = scmp.eq.s32.totalorder %s24, 1
      %p47 = por %p45, %p46
      %p49 = scmp.ne.s32.totalorder %s32, %s48
      %p50 = scmp.eq.s32.totalorder %s24, 0
      %p51 = por %p49, %p50
      %s52 = ssub.s32 %s18, %s25
      %p53 = scmp.eq.s32.totalorder %s52, 0
      %s55 = sadd.s32 %s54, 1
      %s56 = scalar_select %p53, %s54, %s55
      %p59 = pneg %p53
      %p60 = scmp.eq.s32.totalorder %s18, 1
      %p61 = por %p59, %p60
      %p62 = scmp.ne.s32.totalorder %s54, %s57
      %p63 = scmp.eq.s32.totalorder %s18, 0
      %p64 = por %p62, %p63
      %p65 = scmp.ne.s32.totalorder %s54, %s57
      %p66 = scmp.eq.s32.totalorder %s23, 1
      %p67 = por %p65, %p66
      %p68 = scmp.ne.s32.totalorder %s57, %s58
      %p69 = scmp.eq.s32.totalorder %s23, 0
      %p70 = por %p68, %p69
      %p71 = scmp.ne.s32.totalorder %s57, %s58
      %p72 = scmp.eq.s32.totalorder %s24, 1
      %p73 = por %p71, %p72
      %p75 = scmp.ne.s32.totalorder %s58, %s74
      %p76 = scmp.eq.s32.totalorder %s24, 0
      %p77 = por %p75, %p76
      %s78 = ssub.s32 %s18, %s25
      %p79 = scmp.eq.s32.totalorder %s78, 0
      %s81 = sadd.s32 %s80, 1
      %s82 = scalar_select %p79, %s80, %s81
      %p85 = pneg %p79
      %p86 = scmp.eq.s32.totalorder %s18, 1
      %p87 = por %p85, %p86
      %p88 = scmp.ne.s32.totalorder %s80, %s83
      %p89 = scmp.eq.s32.totalorder %s18, 0
      %p90 = por %p88, %p89
      %p91 = scmp.ne.s32.totalorder %s80, %s83
      %p92 = scmp.eq.s32.totalorder %s23, 1
      %p93 = por %p91, %p92
      %p94 = scmp.ne.s32.totalorder %s83, %s84
      %p95 = scmp.eq.s32.totalorder %s23, 0
      %p96 = por %p94, %p95
      %p97 = scmp.ne.s32.totalorder %s83, %s84
      %p98 = scmp.eq.s32.totalorder %s24, 1
      %p99 = por %p97, %p98
      %p101 = scmp.ne.s32.totalorder %s84, %s100
      %p102 = scmp.eq.s32.totalorder %s24, 0
      %p103 = por %p101, %p102
      %s104 = ssub.s32 %s18, %s25
      %p105 = scmp.eq.s32.totalorder %s104, 0
      %s107 = sadd.s32 %s106, 1
      %s108 = scalar_select %p105, %s106, %s107
      %p111 = pneg %p105
      %p112 = scmp.eq.s32.totalorder %s18, 1
      %p113 = por %p111, %p112
      %p114 = scmp.ne.s32.totalorder %s106, %s109
      %p115 = scmp.eq.s32.totalorder %s18, 0
      %p116 = por %p114, %p115
      %p117 = scmp.ne.s32.totalorder %s106, %s109
      %p118 = scmp.eq.s32.totalorder %s23, 1
      %p119 = por %p117, %p118
      %p120 = scmp.ne.s32.totalorder %s109, %s110
      %p121 = scmp.eq.s32.totalorder %s23, 0
      %p122 = por %p120, %p121
      %p123 = scmp.ne.s32.totalorder %s109, %s110
      %p124 = scmp.eq.s32.totalorder %s24, 1
      %p125 = por %p123, %p124
      %p127 = scmp.ne.s32.totalorder %s110, %s126
      %p128 = scmp.eq.s32.totalorder %s24, 0
      %p129 = por %p127, %p128
      %p130 = scmp.le.s32.totalorder 1, %s18
      %p131 = scmp.lt.s32.totalorder %s18, 3
      %p132 = pnand %p130, %p131
      %p133 = pneg %p132
      // Predicated region
      $region9: #{tpu_custom_call.1} parent=5 // pred_check
        _
      $region10: #{tpu_custom_call.1} parent=5 // pred_check_branch
        %135 = sbr.rel (%p132) target = $region12
      $region11: #{tpu_custom_call.1} parent=5 // pred_region
        %s136 = ssub.s32 %s18, 1
      $region12: #{tpu_custom_call.1} parent=5 // pred_fallthru
        _
      %p137 = scmp.lt.s32.totalorder %s18, 2
      // Predicated region
      $region13: #{tpu_custom_call.1} parent=5 // pred_check
        %p138 = pneg %p137
      $region14: #{tpu_custom_call.1} parent=5 // pred_check_branch
        %140 = sbr.rel (%p138) target = $region16
      $region15: #{tpu_custom_call.1} parent=5 // pred_region
        // Predicated region
        $region17: #{tpu_custom_call.1} parent=15 // pred_check
          %p141 = pneg %p38
        $region18: #{tpu_custom_call.1} parent=15 // pred_check_branch
          %143 = sbr.rel (%p141) target = $region20
        $region19: #{tpu_custom_call.1} parent=15 // pred_region
          %s144 = sand.u32 %s28, 1
          %s145 = scalar_lea.sflag [#allocation3], %s144
          %s146 = sand.u32 %s28, 1
          %s147 = smul.addr %s146, 8
          %s148 = scalar_lea.vmem [#allocation2], %s147
          %s150 = ssub.s32 128, 128
          %151 = vsyncadd %s145, %s150
          %s152 = smul.addr %s18, 128
          %s153 = scalar_lea.hbm %s0, %s152
          %s155 = sshll.u32 %s148, 4
          %s156 = int_to_ptr.vmem [resolvable:$true] %s155
          %158 = dma.hbm_to_vmem [thread:$0]  %s153, 128, %s156, %s145
        $region20: #{tpu_custom_call.1} parent=15 // pred_fallthru
          _
        // Predicated region
        $region21: #{tpu_custom_call.1} parent=15 // pred_check
          %p159 = pneg %p64
        $region22: #{tpu_custom_call.1} parent=15 // pred_check_branch
          %161 = sbr.rel (%p159) target = $region24
        $region23: #{tpu_custom_call.1} parent=15 // pred_region
          %s162 = sand.u32 %s18, 1
          %s163 = scalar_lea.sflag [#allocation6], %s162
          %s164 = sand.u32 %s54, 1
          %s165 = smul.addr %s164, 8
          %s166 = scalar_lea.vmem [#allocation5], %s165
          %s168 = ssub.s32 128, 128
          %169 = vsyncadd %s163, %s168
          %s170 = smul.addr %s18, 128
          %s171 = scalar_lea.hbm %s1, %s170
          %s173 = sshll.u32 %s166, 4
          %s174 = int_to_ptr.vmem [resolvable:$true] %s173
          %176 = dma.hbm_to_vmem [thread:$0]  %s171, 128, %s174, %s163
        $region24: #{tpu_custom_call.1} parent=15 // pred_fallthru
          _
        // Predicated region
        $region25: #{tpu_custom_call.1} parent=15 // pred_check
          %p177 = pneg %p90
        $region26: #{tpu_custom_call.1} parent=15 // pred_check_branch
          %179 = sbr.rel (%p177) target = $region28
        $region27: #{tpu_custom_call.1} parent=15 // pred_region
          %s180 = sand.u32 %s18, 1
          %s181 = scalar_lea.sflag [#allocation6], %s180
          %s182 = sand.u32 %s80, 1
          %s183 = smul.addr %s182, 8
          %s184 = scalar_lea.vmem [#allocation7], %s183
          %s186 = ssub.s32 128, 128
          %187 = vsyncadd %s181, %s186
          %s188 = smul.addr %s18, 128
          %s189 = scalar_lea.hbm %s2, %s188
          %s191 = sshll.u32 %s184, 4
          %s192 = int_to_ptr.vmem [resolvable:$true] %s191
          %194 = dma.hbm_to_vmem [thread:$0]  %s189, 128, %s192, %s181
        $region28: #{tpu_custom_call.1} parent=15 // pred_fallthru
          _
      $region16: #{tpu_custom_call.1} parent=5 // pred_fallthru
        _
      %p195 = scmp.le.s32.totalorder 1, %s18
      %p196 = scmp.lt.s32.totalorder %s18, 3
      %p197 = pnand %p195, %p196
      %p198 = pneg %p197
      // Predicated region
      $region29: #{tpu_custom_call.1} parent=5 // pred_check
        _
      $region30: #{tpu_custom_call.1} parent=5 // pred_check_branch
        %200 = sbr.rel (%p197) target = $region32
      $region31: #{tpu_custom_call.1} parent=5 // pred_region
        %s201 = ssub.s32 %s18, 1
        %s202 = sand.u32 %s31, 1
        %s203 = scalar_lea.sflag [#allocation3], %s202
        %s204 = sand.u32 %s31, 1
        %s205 = smul.addr %s204, 8
        %s206 = scalar_lea.vmem [#allocation2], %s205
        // Predicated region
        $region33: #{tpu_custom_call.1} parent=31 // pred_check
          %p207 = pneg %p44
        $region34: #{tpu_custom_call.1} parent=31 // pred_check_branch
          %209 = sbr.rel (%p207) target = $region36
        $region35: #{tpu_custom_call.1} parent=31 // pred_region
          %210 = dma.done %s203, 128
        $region36: #{tpu_custom_call.1} parent=31 // pred_fallthru
          _
        %s211 = sand.u32 %s23, 1
        %s212 = scalar_lea.sflag [#allocation6], %s211
        %s213 = sand.u32 %s57, 1
        %s214 = smul.addr %s213, 8
        %s215 = scalar_lea.vmem [#allocation5], %s214
        // Predicated region
        $region37: #{tpu_custom_call.1} parent=31 // pred_check
          %p216 = pneg %p70
        $region38: #{tpu_custom_call.1} parent=31 // pred_check_branch
          %218 = sbr.rel (%p216) target = $region40
        $region39: #{tpu_custom_call.1} parent=31 // pred_region
          %219 = dma.done %s212, 128
        $region40: #{tpu_custom_call.1} parent=31 // pred_fallthru
          _
        %s220 = sand.u32 %s23, 1
        %s221 = scalar_lea.sflag [#allocation6], %s220
        %s222 = sand.u32 %s83, 1
        %s223 = smul.addr %s222, 8
        %s224 = scalar_lea.vmem [#allocation7], %s223
        // Predicated region
        $region41: #{tpu_custom_call.1} parent=31 // pred_check
          %p225 = pneg %p96
        $region42: #{tpu_custom_call.1} parent=31 // pred_check_branch
          %227 = sbr.rel (%p225) target = $region44
        $region43: #{tpu_custom_call.1} parent=31 // pred_region
          %228 = dma.done %s221, 128
        $region44: #{tpu_custom_call.1} parent=31 // pred_fallthru
          _
        %s229 = sand.u32 %s31, 1
        %s230 = scalar_lea.sflag [#allocation3], %s229
        %s231 = sand.u32 %s31, 1
        %s232 = smul.addr %s231, 8
        %s233 = scalar_lea.vmem [#allocation2], %s232
        %p234 = pneg %p44
        %p235 = pneg %p41
        %s236 = sand.u32 %s23, 1
        %s237 = scalar_lea.sflag [#allocation6], %s236
        %s238 = sand.u32 %s57, 1
        %s239 = smul.addr %s238, 8
        %s240 = scalar_lea.vmem [#allocation5], %s239
        %p241 = pneg %p70
        %p242 = pneg %p67
        %s243 = sand.u32 %s23, 1
        %s244 = scalar_lea.sflag [#allocation6], %s243
        %s245 = sand.u32 %s83, 1
        %s246 = smul.addr %s245, 8
        %s247 = scalar_lea.vmem [#allocation7], %s246
        %p248 = pneg %p96
        %p249 = pneg %p93
        %p250 = pneg %p122
        %p251 = pneg %p119
        %s252 = sand.u32 %s109, 1
        %s253 = scalar_lea.sflag [#allocation4], %s252
        %s254 = sand.u32 %s109, 1
        %s255 = smul.addr %s254, 8
        %s256 = scalar_lea.vmem [#allocation8], %s255
        %v257 = vld [vmem:[%s206] sm:$0xff]
        %v258 = vld [vmem:[%s215] sm:$0xff]
        %v259 = vld [vmem:[%s224] sm:$0xff]
        %vm260 = vcmask 261120
        %v261 = vsel %vm260, %v257, -inf
        %262 = vmax.xlane.f32.xlu0 %v261
        %v263 = vpop.xlane.xlu0 %262
        %v264 = vsub.f32 %v257, %v263
        %v265 = vmul.f32 %v264, 1.442695
        %v266 = vpow.pop %v265
        %v267 = vsel %vm260, %v266, 0.0
        %268 = vadd.xlane.f32.xlu0 %v267
        %v269 = vpop.xlane.xlu0 %268
        %v270 = vrcp.pop %v269
        %v271 = vlaneseq
        %v272 = vand.u32 %v271, 127
        %273 = vset.pattern.permute.xlu0 0
        %274 = vperm.xlu0 %273, %v258
        %v275 = vpop.permute.xlu0 %274
        %vm276 = vcmp.eq.s32.totalorder %v272, %v275
        %v277 = vsel %vm276, %v266, 0.0
        %v278 = vsel %vm260, %v277, 0.0
        %279 = vadd.xlane.f32.xlu0 %v278
        %v280 = vpop.xlane.xlu0 %279
        %v281 = vmul.f32 %v280, %v270
        %v282 = vmax.f32 %v281, 1e-07
        %v283 = vmin.f32 %v282, 1.0
        %v284 = vpow.f32 %v283, 0.7
        %v285 = vsub.f32 1.0, %v284
        %v286 = vrcp.pop 0.7
        %v287 = vmul.f32 %v285, %v286
        %v288 = vmul.f32 %v287, %v259
        %s289 = smul.u32 %s23, 8
        %v290 = vlaneseq
        %v291 = vshrl.u32 %v290, 7
        %v292 = vstv %s289
        %v293 = vadd.s32 %v292, %v291
        %vm294 = vcmp.lt.s32.totalorder %v293, 12
        %v295 = vsel %vm294, %v288, 0.0
        %vm296 = vcmask 7168
        %297 = vst.msk [vmem:[%s256] sm:$0xff] %vm296, %v295
        %s298 = sand.u32 %s109, 1
        %s299 = scalar_lea.sflag [#allocation4], %s298
        %s300 = sand.u32 %s109, 1
        %s301 = smul.addr %s300, 8
        %s302 = scalar_lea.vmem [#allocation8], %s301
        // Predicated region
        $region45: #{tpu_custom_call.1} parent=31 // pred_check
          %p303 = pneg %p119
        $region46: #{tpu_custom_call.1} parent=31 // pred_check_branch
          %305 = sbr.rel (%p303) target = $region48
        $region47: #{tpu_custom_call.1} parent=31 // pred_region
          %s307 = ssub.s32 128, 128
          %308 = vsyncadd %s299, %s307
          %s309 = smul.addr %s23, 128
          %s310 = scalar_lea.hbm %s3, %s309
          %s312 = sshll.u32 %s302, 4
          %s313 = int_to_ptr.vmem [resolvable:$true] %s312
          %315 = dma.vmem_to_hbm [thread:$0]  %s313, 128, %s310, %s299
        $region48: #{tpu_custom_call.1} parent=31 // pred_fallthru
          _
      $region32: #{tpu_custom_call.1} parent=5 // pred_fallthru
        _
      %p316 = scmp.le.s32.totalorder 2, %s18
      // Predicated region
      $region49: #{tpu_custom_call.1} parent=5 // pred_check
        %p317 = pneg %p316
      $region50: #{tpu_custom_call.1} parent=5 // pred_check_branch
        %319 = sbr.rel (%p317) target = $region52
      $region51: #{tpu_custom_call.1} parent=5 // pred_region
        %s320 = ssub.s32 %s18, 2
        // Predicated region
        $region53: #{tpu_custom_call.1} parent=51 // pred_check
          %p321 = pneg %p125
        $region54: #{tpu_custom_call.1} parent=51 // pred_check_branch
          %323 = sbr.rel (%p321) target = $region56
        $region55: #{tpu_custom_call.1} parent=51 // pred_region
          %s324 = sand.u32 %s110, 1
          %s325 = scalar_lea.sflag [#allocation4], %s324
          %s326 = sand.u32 %s110, 1
          %s327 = smul.addr %s326, 8
          %s328 = scalar_lea.vmem [#allocation8], %s327
          %329 = dma.done %s325, 128
        $region56: #{tpu_custom_call.1} parent=51 // pred_fallthru
          _
      $region52: #{tpu_custom_call.1} parent=5 // pred_fallthru
        _
    $region6: #{tpu_custom_call.1} parent=1 // loop_footer
      %s22 = sadd.s32 1, %s18
    $region7: #{tpu_custom_call.1} parent=1 // loop_footer_branch
      %17 = sbr.rel target = $region3
    $region8: #{tpu_custom_call.1} parent=1 // loop_exit
      _
    %330 = vsyncpa [#allocation3], 1
    %s331 = scalar_lea.sflag [#allocation3], 1
    %332 = vsyncpa %s331, 1
    %333 = vsyncpa [#allocation6], 1
    %s334 = scalar_lea.sflag [#allocation6], 1
    %335 = vsyncpa %s334, 1
    %336 = vsyncpa [#allocation4], 1
    %s337 = scalar_lea.sflag [#allocation4], 1
    %338 = vsyncpa %s337, 1

</llo_original>
